<compile_context>
chip_gen: v7x
topology: tpu7x:2x2x1
jax: 0.10.0
libtpu: 0.0.40
codegen_flags: <defaults>
</compile_context>

<pallas_src>
import functools

import jax
import jax.numpy as jnp
from jax.experimental import pallas as pl
from jax.experimental.pallas import tpu as pltpu

LANE = 128


def _gaussian_actor_kernel(x_ref, w1_ref, b1_ref, w2_ref, b2_ref, w3_ref, b3_ref,
                           o_ref, *, action_dim, logstd_min, logstd_max):
    # Hidden layer 1: bf16 @ bf16 -> f32 accumulation; bias + ReLU in f32.
    h = jnp.dot(x_ref[...], w1_ref[...], preferred_element_type=jnp.float32)
    h = jnp.maximum(h + b1_ref[...], 0.0).astype(jnp.bfloat16)
    # Hidden layer 2.
    h = jnp.dot(h, w2_ref[...], preferred_element_type=jnp.float32)
    h = jnp.maximum(h + b2_ref[...], 0.0).astype(jnp.bfloat16)
    # Linear head (zero-padded to a lane-dense 128-wide output).
    y = jnp.dot(h, w3_ref[...], preferred_element_type=jnp.float32) + b3_ref[...]
    # Hard-clip only the logstd lanes [action_dim, 2*action_dim); mean lanes and
    # the zero padding are left untouched.
    lane = jax.lax.broadcasted_iota(jnp.int32, y.shape, dimension=1)
    is_logstd = (lane >= action_dim) & (lane < 2 * action_dim)
    y = jnp.where(is_logstd, jnp.clip(y, logstd_min, logstd_max), y)
    o_ref[...] = y.astype(o_ref.dtype)


def _pick_block_b(batch):
    """Capped, sublane-aligned batch tile with >=2 grid steps when possible."""
    if batch <= 8:
        return batch                       # full-extent block is always legal
    bb = min(512, pl.cdiv(batch, 2))       # cap tile; keep >=2 steps (v7x megacore)
    bb = ((bb + 7) // 8) * 8               # sublane-align (multiple of 8)
    return min(bb, batch)


@functools.partial(
    jax.jit, static_argnames=("action_dim", "logstd_min", "logstd_max", "block_b")
)
def gaussian_actor_forward(x, params, *, action_dim, logstd_min=-20.0,
                           logstd_max=2.0, block_b=None):
    """GaussianActor.forward: obs [B, D] -> (mean [B, A], logstd [B, A])."""
    w1, b1 = params["w1"], params["b1"]
    w2, b2 = params["w2"], params["b2"]
    w3, b3 = params["w3"], params["b3"]

    B, D = x.shape
    H1 = w1.shape[1]
    H2 = w2.shape[1]
    O = w3.shape[1]
    assert O == 2 * action_dim, "head width must be 2*action_dim (mean|logstd)"

    # Lane-dense head: pad the output columns up to a multiple of 128 so the
    # output store is an unmasked vst. Padding columns produce exact zeros.
    O_pad = max(LANE, ((O + LANE - 1) // LANE) * LANE)
    w3_p = jnp.zeros((H2, O_pad), w3.dtype).at[:, :O].set(w3)
    b3_p = jnp.zeros((1, O_pad), b3.dtype).at[:, :O].set(b3)

    # bf16 streaming of activations/weights; biases stay f32 for the f32 adds.
    x_lo = x.astype(jnp.bfloat16)
    w1_lo = w1.astype(jnp.bfloat16)
    w2_lo = w2.astype(jnp.bfloat16)
    w3_lo = w3_p.astype(jnp.bfloat16)
    b1_f = b1.astype(jnp.float32)
    b2_f = b2.astype(jnp.float32)
    b3_f = b3_p.astype(jnp.float32)

    if block_b is None:
        block_b = _pick_block_b(B)
    grid = (pl.cdiv(B, block_b),)
    # If B % block_b != 0, the padded tail rows of the x tile hold unspecified
    # data; they flow harmlessly through the dots/ReLU and the masked output
    # writeback discards them.

    kernel = functools.partial(
        _gaussian_actor_kernel,
        action_dim=int(action_dim),
        logstd_min=float(logstd_min),
        logstd_max=float(logstd_max),
    )

    out_padded = pl.pallas_call(
        kernel,
        out_shape=jax.ShapeDtypeStruct((B, O_pad), jnp.float32),
        grid_spec=pltpu.PrefetchScalarGridSpec(
            num_scalar_prefetch=0,
            grid=grid,
            in_specs=[
                # batch tile of observations
                pl.BlockSpec((block_b, D), lambda i: (i, 0)),
                # full weight / bias blocks, constant across the batch grid
                pl.BlockSpec((D, H1), lambda i: (0, 0)),
                pl.BlockSpec((1, H1), lambda i: (0, 0)),
                pl.BlockSpec((H1, H2), lambda i: (0, 0)),
                pl.BlockSpec((1, H2), lambda i: (0, 0)),
                pl.BlockSpec((H2, O_pad), lambda i: (0, 0)),
                pl.BlockSpec((1, O_pad), lambda i: (0, 0)),
            ],
            out_specs=pl.BlockSpec((block_b, O_pad), lambda i: (i, 0)),
        ),
        compiler_params=pltpu.CompilerParams(
            dimension_semantics=("parallel",),
            # Explicit scoped-VMEM budget: safe on v5e/v6e (128 MiB physical)
            # and v7x (64 MiB physical). Actual use is ~1 MiB at block_b=512.
            vmem_limit_bytes=32 * 1024 * 1024,
        ),
    )(x_lo, w1_lo, b1_f, w2_lo, b2_f, w3_lo, b3_f)

    mean = out_padded[:, :action_dim]
    logstd = out_padded[:, action_dim:O]
    return mean, logstd


def init_params(key, input_dim, hidden_dims, head_dim, dtype=jnp.float32):
    """PyTorch nn.Linear-style init (uniform +/- 1/sqrt(fan_in)); weights stored
    as [in_dim, out_dim] so the kernel computes x @ W + b."""
    dims = [input_dim] + list(hidden_dims) + [head_dim]
    params = {}
    for li, (fan_in, fan_out) in enumerate(zip(dims[:-1], dims[1:]), start=1):
        key, kw, kb = jax.random.split(key, 3)
        bound = 1.0 / jnp.sqrt(fan_in)
        params[f"w{li}"] = jax.random.uniform(
            kw, (fan_in, fan_out), dtype=dtype, minval=-bound, maxval=bound
        )
        params[f"b{li}"] = jax.random.uniform(
            kb, (1, fan_out), dtype=dtype, minval=-bound, maxval=bound
        )
    return params


def reference_forward(x, params, action_dim, logstd_min=-20.0, logstd_max=2.0):
    """Pure-JAX reference with the same bf16-stream / f32-accumulate recipe."""
    x_lo = x.astype(jnp.bfloat16)
    w1 = params["w1"].astype(jnp.bfloat16)
    w2 = params["w2"].astype(jnp.bfloat16)
    w3 = params["w3"].astype(jnp.bfloat16)
    h = jnp.dot(x_lo, w1, preferred_element_type=jnp.float32) + params["b1"]
    h = jnp.maximum(h, 0.0).astype(jnp.bfloat16)
    h = jnp.dot(h, w2, preferred_element_type=jnp.float32) + params["b2"]
    h = jnp.maximum(h, 0.0).astype(jnp.bfloat16)
    out = jnp.dot(h, w3, preferred_element_type=jnp.float32) + params["b3"]
    mean = out[:, :action_dim]
    logstd = jnp.clip(out[:, action_dim:], logstd_min, logstd_max)
    return mean, logstd


if __name__ == "__main__":
    # Small shapes consistent with GaussianActor(input_dim=32, output_dim=8,
    # hidden_dims=[64, 64], conditioned_logstd=True) -> MLP head width 16.
    B, INPUT_DIM, ACTION_DIM = 16, 32, 8
    HIDDEN_DIMS = [64, 64]

    key = jax.random.PRNGKey(0)
    key, kx = jax.random.split(key)
    obs = jax.random.normal(kx, (B, INPUT_DIM), dtype=jnp.float32)
    params = init_params(key, INPUT_DIM, HIDDEN_DIMS, 2 * ACTION_DIM)

    mean, logstd = gaussian_actor_forward(obs, params, action_dim=ACTION_DIM)
    mean = jax.block_until_ready(mean)
    logstd = jax.block_until_ready(logstd)

    # Correctness check against a pure-JAX reference.
    ref_mean, ref_logstd = reference_forward(obs, params, ACTION_DIM)
    assert mean.shape == (B, ACTION_DIM) and logstd.shape == (B, ACTION_DIM)
    assert jnp.allclose(mean, ref_mean, atol=1e-2, rtol=1e-2), "mean mismatch"
    assert jnp.allclose(logstd, ref_logstd, atol=1e-2, rtol=1e-2), "logstd mismatch"
    assert bool(jnp.all(logstd <= 2.0)) and bool(jnp.all(logstd >= -20.0))

    # TODO(synk): sample()/evaluate() wrap (mean, logstd) in torch.distributions
    # Normal (rsample / log_prob); that is trivial plain-JAX work around this
    # kernel (jax.random.normal + analytic log-prob) and is not kernelized.
    print("KERNEL_OK")
</pallas_src>

<mosaic_0001>
module attributes {stable_mosaic.version = 11 : i64} {
  func.func @_gaussian_actor_kernel(%arg0: i32, %arg1: memref<8x32xbf16, #tpu.memory_space<vmem>>, %arg2: memref<32x64xbf16, #tpu.memory_space<vmem>>, %arg3: memref<1x64xf32, #tpu.memory_space<vmem>>, %arg4: memref<64x64xbf16, #tpu.memory_space<vmem>>, %arg5: memref<1x64xf32, #tpu.memory_space<vmem>>, %arg6: memref<64x128xbf16, #tpu.memory_space<vmem>>, %arg7: memref<1x128xf32, #tpu.memory_space<vmem>>, %arg8: memref<8x128xf32, #tpu.memory_space<vmem>>) attributes {dimension_semantics = [#tpu.dimension_semantics<parallel>], iteration_bounds = array<i64: 2>, scalar_prefetch = 0 : i64, scratch_operands = 0 : i64, tpu.core_type = #tpu.core_type<tc>, window_params = [{transform_indices = @transform_0, window_bounds = array<i64: 8, 32>}, {pipeline_mode = #tpu.pipeline_mode<synchronous>, transform_indices = @transform_1, window_bounds = array<i64: 32, 64>}, {pipeline_mode = #tpu.pipeline_mode<synchronous>, transform_indices = @transform_2, window_bounds = array<i64: 1, 64>}, {pipeline_mode = #tpu.pipeline_mode<synchronous>, transform_indices = @transform_3, window_bounds = array<i64: 64, 64>}, {pipeline_mode = #tpu.pipeline_mode<synchronous>, transform_indices = @transform_4, window_bounds = array<i64: 1, 64>}, {pipeline_mode = #tpu.pipeline_mode<synchronous>, transform_indices = @transform_5, window_bounds = array<i64: 64, 128>}, {pipeline_mode = #tpu.pipeline_mode<synchronous>, transform_indices = @transform_6, window_bounds = array<i64: 1, 128>}, {transform_indices = @transform_7, window_bounds = array<i64: 8, 128>}]} {
    %c0 = arith.constant 0 : index
    %c0_0 = arith.constant 0 : index
    %0 = vector.load %arg1[%c0, %c0_0] : memref<8x32xbf16, #tpu.memory_space<vmem>>, vector<8x32xbf16>
    %c0_1 = arith.constant 0 : index
    %c0_2 = arith.constant 0 : index
    %1 = vector.load %arg2[%c0_1, %c0_2] : memref<32x64xbf16, #tpu.memory_space<vmem>>, vector<32x64xbf16>
    %cst = arith.constant dense<0.000000e+00> : vector<8x64xf32>
    %2 = tpu.matmul %0, %1, %cst {dimension_numbers = #tpu.dot_dimension_numbers<[1], [0], [0], [1], [0, 0, 1, 1], [], []>} : vector<8x32xbf16>, vector<32x64xbf16>, vector<8x64xf32> -> vector<8x64xf32>
    %c0_3 = arith.constant 0 : index
    %c0_4 = arith.constant 0 : index
    %3 = vector.load %arg3[%c0_3, %c0_4] : memref<1x64xf32, #tpu.memory_space<vmem>>, vector<1x64xf32>
    %4 = vector.broadcast %3 : vector<1x64xf32> to vector<8x64xf32>
    %5 = arith.addf %2, %4 : vector<8x64xf32>
    %cst_5 = arith.constant 0.000000e+00 : f32
    %6 = vector.broadcast %cst_5 : f32 to vector<8x64xf32>
    %7 = arith.maximumf %5, %6 : vector<8x64xf32>
    %8 = arith.truncf %7 : vector<8x64xf32> to vector<8x64xbf16>
    %c0_6 = arith.constant 0 : index
    %c0_7 = arith.constant 0 : index
    %9 = vector.load %arg4[%c0_6, %c0_7] : memref<64x64xbf16, #tpu.memory_space<vmem>>, vector<64x64xbf16>
    %cst_8 = arith.constant dense<0.000000e+00> : vector<8x64xf32>
    %10 = tpu.matmul %8, %9, %cst_8 {dimension_numbers = #tpu.dot_dimension_numbers<[1], [0], [0], [1], [0, 0, 1, 1], [], []>} : vector<8x64xbf16>, vector<64x64xbf16>, vector<8x64xf32> -> vector<8x64xf32>
    %c0_9 = arith.constant 0 : index
    %c0_10 = arith.constant 0 : index
    %11 = vector.load %arg5[%c0_9, %c0_10] : memref<1x64xf32, #tpu.memory_space<vmem>>, vector<1x64xf32>
    %12 = vector.broadcast %11 : vector<1x64xf32> to vector<8x64xf32>
    %13 = arith.addf %10, %12 : vector<8x64xf32>
    %cst_11 = arith.constant 0.000000e+00 : f32
    %14 = vector.broadcast %cst_11 : f32 to vector<8x64xf32>
    %15 = arith.maximumf %13, %14 : vector<8x64xf32>
    %16 = arith.truncf %15 : vector<8x64xf32> to vector<8x64xbf16>
    %c0_12 = arith.constant 0 : index
    %c0_13 = arith.constant 0 : index
    %17 = vector.load %arg6[%c0_12, %c0_13] : memref<64x128xbf16, #tpu.memory_space<vmem>>, vector<64x128xbf16>
    %cst_14 = arith.constant dense<0.000000e+00> : vector<8x128xf32>
    %18 = tpu.matmul %16, %17, %cst_14 {dimension_numbers = #tpu.dot_dimension_numbers<[1], [0], [0], [1], [0, 0, 1, 1], [], []>} : vector<8x64xbf16>, vector<64x128xbf16>, vector<8x128xf32> -> vector<8x128xf32>
    %c0_15 = arith.constant 0 : index
    %c0_16 = arith.constant 0 : index
    %19 = vector.load %arg7[%c0_15, %c0_16] : memref<1x128xf32, #tpu.memory_space<vmem>>, vector<1x128xf32>
    %20 = vector.broadcast %19 : vector<1x128xf32> to vector<8x128xf32>
    %21 = arith.addf %18, %20 : vector<8x128xf32>
    %22 = tpu.iota {dimensions = array<i32: 1>} : vector<8x128xi32>
    %c8_i32 = arith.constant 8 : i32
    %23 = vector.broadcast %c8_i32 : i32 to vector<8x128xi32>
    %24 = arith.cmpi sge, %22, %23 : vector<8x128xi32>
    %c16_i32 = arith.constant 16 : i32
    %25 = vector.broadcast %c16_i32 : i32 to vector<8x128xi32>
    %26 = arith.cmpi slt, %22, %25 : vector<8x128xi32>
    %27 = arith.andi %24, %26 : vector<8x128xi1>
    %cst_17 = arith.constant -2.000000e+01 : f32
    %cst_18 = arith.constant 2.000000e+00 : f32
    %28 = vector.broadcast %cst_17 : f32 to vector<8x128xf32>
    %29 = arith.maximumf %28, %21 : vector<8x128xf32>
    %30 = vector.broadcast %cst_18 : f32 to vector<8x128xf32>
    %31 = arith.minimumf %30, %29 : vector<8x128xf32>
    %32 = arith.select %27, %31, %21 : vector<8x128xi1>, vector<8x128xf32>
    %c0_19 = arith.constant 0 : index
    %c0_20 = arith.constant 0 : index
    %33 = vector.load %arg8[%c0_19, %c0_20] : memref<8x128xf32, #tpu.memory_space<vmem>>, vector<8x128xf32>
    tpu.vector_store %arg8[%c0_19, %c0_20], %32 {strides = array<i32>} : memref<8x128xf32, #tpu.memory_space<vmem>>, vector<8x128xf32>,
    return
  }
  func.func @transform_0(%arg0: i32) -> (i32, i32) {
    %c0_i32 = arith.constant 0 : i32
    %c0_i32_0 = arith.constant 0 : i32
    return %arg0, %c0_i32 : i32, i32
  }
  func.func @transform_1(%arg0: i32) -> (i32, i32) {
    %c0_i32 = arith.constant 0 : i32
    %c0_i32_0 = arith.constant 0 : i32
    %c0_i32_1 = arith.constant 0 : i32
    return %c0_i32, %c0_i32_0 : i32, i32
  }
  func.func @transform_2(%arg0: i32) -> (i32, i32) {
    %c0_i32 = arith.constant 0 : i32
    %c0_i32_0 = arith.constant 0 : i32
    %c0_i32_1 = arith.constant 0 : i32
    return %c0_i32, %c0_i32_0 : i32, i32
  }
  func.func @transform_3(%arg0: i32) -> (i32, i32) {
    %c0_i32 = arith.constant 0 : i32
    %c0_i32_0 = arith.constant 0 : i32
    %c0_i32_1 = arith.constant 0 : i32
    return %c0_i32, %c0_i32_0 : i32, i32
  }
  func.func @transform_4(%arg0: i32) -> (i32, i32) {
    %c0_i32 = arith.constant 0 : i32
    %c0_i32_0 = arith.constant 0 : i32
    %c0_i32_1 = arith.constant 0 : i32
    return %c0_i32, %c0_i32_0 : i32, i32
  }
  func.func @transform_5(%arg0: i32) -> (i32, i32) {
    %c0_i32 = arith.constant 0 : i32
    %c0_i32_0 = arith.constant 0 : i32
    %c0_i32_1 = arith.constant 0 : i32
    return %c0_i32, %c0_i32_0 : i32, i32
  }
  func.func @transform_6(%arg0: i32) -> (i32, i32) {
    %c0_i32 = arith.constant 0 : i32
    %c0_i32_0 = arith.constant 0 : i32
    %c0_i32_1 = arith.constant 0 : i32
    return %c0_i32, %c0_i32_0 : i32, i32
  }
  func.func @transform_7(%arg0: i32) -> (i32, i32) {
    %c0_i32 = arith.constant 0 : i32
    %c0_i32_0 = arith.constant 0 : i32
    return %arg0, %c0_i32 : i32, i32
  }
}

</mosaic_0001>

<llo_original>
// kernel: gaussian_actor_forward.1
$region0: #{gaussian_actor_forward.1}
  #allocation0 [shape = 'u32[]', space=smem, size = 0x4, offset = 0x4, fixed_abs, tag = 'smem constant byte address 0x4 - core index']
  #allocation1 [shape = 'u32[144,128]{1,0:T(1,128)}', space=vmem, size = 0x12000, scoped, tag = 'internal scratch']
  %s0 = inlined_call_operand.vmem [shape: bf16[16,32], index: 0, kind: input, shape index: {}]
  %s1 = inlined_call_operand.vmem [shape: bf16[32,64], index: 1, kind: input, shape index: {}]
  %s2 = inlined_call_operand.vmem [shape: f32[1,64], index: 2, kind: input, shape index: {}]
  %s3 = inlined_call_operand.vmem [shape: bf16[64,64], index: 3, kind: input, shape index: {}]
  %s4 = inlined_call_operand.vmem [shape: f32[1,64], index: 4, kind: input, shape index: {}]
  %s5 = inlined_call_operand.vmem [shape: bf16[64,128], index: 5, kind: input, shape index: {}]
  %s6 = inlined_call_operand.vmem [shape: f32[1,128], index: 6, kind: input, shape index: {}]
  %s7 = inlined_call_operand.vmem [shape: f32[16,128], index: 7, kind: output, shape index: {}]
  %s8 = sld [smem:[#allocation0]]
  $region61: #{gaussian_actor_forward.1} parent=0
    _
  %s10 = ssub.s32 1, %s8
  %s11 = scalar_select 0, %s10, %s8
  loop: start=0, step=1, limit=4
  $region2: #{gaussian_actor_forward.1} parent=0 // loop_pre_header
    _
  $region3: #{gaussian_actor_forward.1} parent=0 // loop_header
    %s13 = sphi 0, %s17
    %p14 = scmp.ge.s32.totalorder %s13, 4
    %s23 = sphi 0, %s25
    %s26 = sphi 0, %s23
    %s27 = sphi 0, %s26
    %s43 = sphi 0, %s27
    %s47 = sphi 0, %s47
    %s49 = sphi 0, %s47
    %s50 = sphi 0, %s49
    %s64 = sphi 0, %s50
    %s68 = sphi 0, %s68
    %s70 = sphi 0, %s68
    %s71 = sphi 0, %s70
    %s85 = sphi 0, %s71
    %s89 = sphi 0, %s89
    %s91 = sphi 0, %s89
    %s92 = sphi 0, %s91
    %s106 = sphi 0, %s92
    %s110 = sphi 0, %s110
    %s112 = sphi 0, %s110
    %s113 = sphi 0, %s112
    %s127 = sphi 0, %s113
    %s131 = sphi 0, %s131
    %s133 = sphi 0, %s131
    %s134 = sphi 0, %s133
    %s148 = sphi 0, %s134
    %s152 = sphi 0, %s152
    %s154 = sphi 0, %s152
    %s155 = sphi 0, %s154
    %s169 = sphi 0, %s155
    %s175 = sphi 0, %s177
    %s178 = sphi 0, %s175
    %s179 = sphi 0, %s178
    %s195 = sphi 0, %s179
  $region4: #{gaussian_actor_forward.1} parent=0 // loop_header_branch
    %16 = sbr.rel (%p14) target = $region8
  $region5: #{gaussian_actor_forward.1} parent=0 // loop_body
    %s18 = ssub.s32 %s13, 1
    %s19 = ssub.s32 %s13, 2
    %s20 = sadd.s32 %s13, 1
    %s21 = ssub.s32 %s13, %s20
    %p22 = scmp.eq.s32.totalorder %s21, 0
    %s24 = sadd.s32 %s23, 1
    %s25 = scalar_select %p22, %s23, %s24
    %p28 = pneg %p22
    %p29 = scmp.eq.s32.totalorder %s13, 1
    %p30 = por %p28, %p29
    %p31 = scmp.ne.s32.totalorder %s23, %s26
    %p32 = scmp.eq.s32.totalorder %s13, 0
    %p33 = por %p31, %p32
    %p34 = scmp.ne.s32.totalorder %s23, %s26
    %p35 = scmp.eq.s32.totalorder %s18, 1
    %p36 = por %p34, %p35
    %p37 = scmp.ne.s32.totalorder %s26, %s27
    %p38 = scmp.eq.s32.totalorder %s18, 0
    %p39 = por %p37, %p38
    %p40 = scmp.ne.s32.totalorder %s26, %s27
    %p41 = scmp.eq.s32.totalorder %s19, 1
    %p42 = por %p40, %p41
    %p44 = scmp.ne.s32.totalorder %s27, %s43
    %p45 = scmp.eq.s32.totalorder %s19, 0
    %p46 = por %p44, %p45
    %s48 = sadd.s32 %s47, 1
    %p51 = scmp.eq.s32.totalorder %s13, 1
    %p52 = scmp.ne.s32.totalorder %s47, %s49
    %p53 = scmp.eq.s32.totalorder %s13, 0
    %p54 = por %p52, %p53
    %p55 = scmp.ne.s32.totalorder %s47, %s49
    %p56 = scmp.eq.s32.totalorder %s18, 1
    %p57 = por %p55, %p56
    %p58 = scmp.ne.s32.totalorder %s49, %s50
    %p59 = scmp.eq.s32.totalorder %s18, 0
    %p60 = por %p58, %p59
    %p61 = scmp.ne.s32.totalorder %s49, %s50
    %p62 = scmp.eq.s32.totalorder %s19, 1
    %p63 = por %p61, %p62
    %p65 = scmp.ne.s32.totalorder %s50, %s64
    %p66 = scmp.eq.s32.totalorder %s19, 0
    %p67 = por %p65, %p66
    %s69 = sadd.s32 %s68, 1
    %p72 = scmp.eq.s32.totalorder %s13, 1
    %p73 = scmp.ne.s32.totalorder %s68, %s70
    %p74 = scmp.eq.s32.totalorder %s13, 0
    %p75 = por %p73, %p74
    %p76 = scmp.ne.s32.totalorder %s68, %s70
    %p77 = scmp.eq.s32.totalorder %s18, 1
    %p78 = por %p76, %p77
    %p79 = scmp.ne.s32.totalorder %s70, %s71
    %p80 = scmp.eq.s32.totalorder %s18, 0
    %p81 = por %p79, %p80
    %p82 = scmp.ne.s32.totalorder %s70, %s71
    %p83 = scmp.eq.s32.totalorder %s19, 1
    %p84 = por %p82, %p83
    %p86 = scmp.ne.s32.totalorder %s71, %s85
    %p87 = scmp.eq.s32.totalorder %s19, 0
    %p88 = por %p86, %p87
    %s90 = sadd.s32 %s89, 1
    %p93 = scmp.eq.s32.totalorder %s13, 1
    %p94 = scmp.ne.s32.totalorder %s89, %s91
    %p95 = scmp.eq.s32.totalorder %s13, 0
    %p96 = por %p94, %p95
    %p97 = scmp.ne.s32.totalorder %s89, %s91
    %p98 = scmp.eq.s32.totalorder %s18, 1
    %p99 = por %p97, %p98
    %p100 = scmp.ne.s32.totalorder %s91, %s92
    %p101 = scmp.eq.s32.totalorder %s18, 0
    %p102 = por %p100, %p101
    %p103 = scmp.ne.s32.totalorder %s91, %s92
    %p104 = scmp.eq.s32.totalorder %s19, 1
    %p105 = por %p103, %p104
    %p107 = scmp.ne.s32.totalorder %s92, %s106
    %p108 = scmp.eq.s32.totalorder %s19, 0
    %p109 = por %p107, %p108
    %s111 = sadd.s32 %s110, 1
    %p114 = scmp.eq.s32.totalorder %s13, 1
    %p115 = scmp.ne.s32.totalorder %s110, %s112
    %p116 = scmp.eq.s32.totalorder %s13, 0
    %p117 = por %p115, %p116
    %p118 = scmp.ne.s32.totalorder %s110, %s112
    %p119 = scmp.eq.s32.totalorder %s18, 1
    %p120 = por %p118, %p119
    %p121 = scmp.ne.s32.totalorder %s112, %s113
    %p122 = scmp.eq.s32.totalorder %s18, 0
    %p123 = por %p121, %p122
    %p124 = scmp.ne.s32.totalorder %s112, %s113
    %p125 = scmp.eq.s32.totalorder %s19, 1
    %p126 = por %p124, %p125
    %p128 = scmp.ne.s32.totalorder %s113, %s127
    %p129 = scmp.eq.s32.totalorder %s19, 0
    %p130 = por %p128, %p129
    %s132 = sadd.s32 %s131, 1
    %p135 = scmp.eq.s32.totalorder %s13, 1
    %p136 = scmp.ne.s32.totalorder %s131, %s133
    %p137 = scmp.eq.s32.totalorder %s13, 0
    %p138 = por %p136, %p137
    %p139 = scmp.ne.s32.totalorder %s131, %s133
    %p140 = scmp.eq.s32.totalorder %s18, 1
    %p141 = por %p139, %p140
    %p142 = scmp.ne.s32.totalorder %s133, %s134
    %p143 = scmp.eq.s32.totalorder %s18, 0
    %p144 = por %p142, %p143
    %p145 = scmp.ne.s32.totalorder %s133, %s134
    %p146 = scmp.eq.s32.totalorder %s19, 1
    %p147 = por %p145, %p146
    %p149 = scmp.ne.s32.totalorder %s134, %s148
    %p150 = scmp.eq.s32.totalorder %s19, 0
    %p151 = por %p149, %p150
    %s153 = sadd.s32 %s152, 1
    %p156 = scmp.eq.s32.totalorder %s13, 1
    %p157 = scmp.ne.s32.totalorder %s152, %s154
    %p158 = scmp.eq.s32.totalorder %s13, 0
    %p159 = por %p157, %p158
    %p160 = scmp.ne.s32.totalorder %s152, %s154
    %p161 = scmp.eq.s32.totalorder %s18, 1
    %p162 = por %p160, %p161
    %p163 = scmp.ne.s32.totalorder %s154, %s155
    %p164 = scmp.eq.s32.totalorder %s18, 0
    %p165 = por %p163, %p164
    %p166 = scmp.ne.s32.totalorder %s154, %s155
    %p167 = scmp.eq.s32.totalorder %s19, 1
    %p168 = por %p166, %p167
    %p170 = scmp.ne.s32.totalorder %s155, %s169
    %p171 = scmp.eq.s32.totalorder %s19, 0
    %p172 = por %p170, %p171
    %s173 = ssub.s32 %s13, %s20
    %p174 = scmp.eq.s32.totalorder %s173, 0
    %s176 = sadd.s32 %s175, 1
    %s177 = scalar_select %p174, %s175, %s176
    %p180 = pneg %p174
    %p181 = scmp.eq.s32.totalorder %s13, 1
    %p182 = por %p180, %p181
    %p183 = scmp.ne.s32.totalorder %s175, %s178
    %p184 = scmp.eq.s32.totalorder %s13, 0
    %p185 = por %p183, %p184
    %p186 = scmp.ne.s32.totalorder %s175, %s178
    %p187 = scmp.eq.s32.totalorder %s18, 1
    %p188 = por %p186, %p187
    %p189 = scmp.ne.s32.totalorder %s178, %s179
    %p190 = scmp.eq.s32.totalorder %s18, 0
    %p191 = por %p189, %p190
    %p192 = scmp.ne.s32.totalorder %s178, %s179
    %p193 = scmp.eq.s32.totalorder %s19, 1
    %p194 = por %p192, %p193
    %p196 = scmp.ne.s32.totalorder %s179, %s195
    %p197 = scmp.eq.s32.totalorder %s19, 0
    %p198 = por %p196, %p197
    %p199 = scmp.le.s32.totalorder 1, %s13
    %p200 = scmp.lt.s32.totalorder %s13, 3
    %p201 = pnand %p199, %p200
    %p202 = pneg %p201
    // Predicated region
    $region9: #{gaussian_actor_forward.1} parent=5 // pred_check
      _
    $region10: #{gaussian_actor_forward.1} parent=5 // pred_check_branch
      %204 = sbr.rel (%p201) target = $region12
    $region11: #{gaussian_actor_forward.1} parent=5 // pred_region
      %s205 = ssub.s32 %s13, 1
      // Predicated region
      $region13: #{gaussian_actor_forward.1} parent=11 // pred_check
        %p206 = pneg %p60
      $region14: #{gaussian_actor_forward.1} parent=11 // pred_check_branch
        %208 = sbr.rel (%p206) target = $region16
      $region15: #{gaussian_actor_forward.1} parent=11 // pred_region
        _
      $region16: #{gaussian_actor_forward.1} parent=11 // pred_fallthru
        _
      // Predicated region
      $region17: #{gaussian_actor_forward.1} parent=11 // pred_check
        %p209 = pneg %p81
      $region18: #{gaussian_actor_forward.1} parent=11 // pred_check_branch
        %211 = sbr.rel (%p209) target = $region20
      $region19: #{gaussian_actor_forward.1} parent=11 // pred_region
        _
      $region20: #{gaussian_actor_forward.1} parent=11 // pred_fallthru
        _
      // Predicated region
      $region21: #{gaussian_actor_forward.1} parent=11 // pred_check
        %p212 = pneg %p102
      $region22: #{gaussian_actor_forward.1} parent=11 // pred_check_branch
        %214 = sbr.rel (%p212) target = $region24
      $region23: #{gaussian_actor_forward.1} parent=11 // pred_region
        _
      $region24: #{gaussian_actor_forward.1} parent=11 // pred_fallthru
        _
      // Predicated region
      $region25: #{gaussian_actor_forward.1} parent=11 // pred_check
        %p215 = pneg %p123
      $region26: #{gaussian_actor_forward.1} parent=11 // pred_check_branch
        %217 = sbr.rel (%p215) target = $region28
      $region27: #{gaussian_actor_forward.1} parent=11 // pred_region
        _
      $region28: #{gaussian_actor_forward.1} parent=11 // pred_fallthru
        _
      // Predicated region
      $region29: #{gaussian_actor_forward.1} parent=11 // pred_check
        %p218 = pneg %p144
      $region30: #{gaussian_actor_forward.1} parent=11 // pred_check_branch
        %220 = sbr.rel (%p218) target = $region32
      $region31: #{gaussian_actor_forward.1} parent=11 // pred_region
        _
      $region32: #{gaussian_actor_forward.1} parent=11 // pred_fallthru
        _
      // Predicated region
      $region33: #{gaussian_actor_forward.1} parent=11 // pred_check
        %p221 = pneg %p165
      $region34: #{gaussian_actor_forward.1} parent=11 // pred_check_branch
        %223 = sbr.rel (%p221) target = $region36
      $region35: #{gaussian_actor_forward.1} parent=11 // pred_region
        _
      $region36: #{gaussian_actor_forward.1} parent=11 // pred_fallthru
        _
    $region12: #{gaussian_actor_forward.1} parent=5 // pred_fallthru
      _
    %p224 = scmp.lt.s32.totalorder %s13, 2
    // Predicated region
    $region37: #{gaussian_actor_forward.1} parent=5 // pred_check
      %p225 = pneg %p224
    $region38: #{gaussian_actor_forward.1} parent=5 // pred_check_branch
      %227 = sbr.rel (%p225) target = $region40
    $region39: #{gaussian_actor_forward.1} parent=5 // pred_region
      // Predicated region
      $region41: #{gaussian_actor_forward.1} parent=39 // pred_check
        %p228 = pneg %p33
      $region42: #{gaussian_actor_forward.1} parent=39 // pred_check_branch
        %230 = sbr.rel (%p228) target = $region44
      $region43: #{gaussian_actor_forward.1} parent=39 // pred_region
        %p231 = scmp.lt.s32.totalorder %s13, 1
        %s232 = scalar_select %p231, %s13, 1
        %s233 = smul.addr %s232, 4
        %s234 = scalar_lea.vmem %s0, %s233
      $region44: #{gaussian_actor_forward.1} parent=39 // pred_fallthru
        _
    $region40: #{gaussian_actor_forward.1} parent=5 // pred_fallthru
      _
    %p235 = scmp.le.s32.totalorder 1, %s13
    %p236 = scmp.lt.s32.totalorder %s13, 3
    %p237 = pnand %p235, %p236
    %p238 = pneg %p237
    // Predicated region
    $region45: #{gaussian_actor_forward.1} parent=5 // pred_check
      _
    $region46: #{gaussian_actor_forward.1} parent=5 // pred_check_branch
      %240 = sbr.rel (%p237) target = $region48
    $region47: #{gaussian_actor_forward.1} parent=5 // pred_region
      %s241 = ssub.s32 %s13, 1
      %p242 = scmp.lt.s32.totalorder %s18, 1
      %s243 = scalar_select %p242, %s18, 1
      %s244 = smul.addr %s243, 4
      %s245 = scalar_lea.vmem %s0, %s244
      %p246 = pneg %p39
      %p247 = pneg %p36
      %p248 = pneg %p60
      %p249 = pneg %p57
      %p250 = pneg %p81
      %p251 = pneg %p78
      %p252 = pneg %p102
      %p253 = pneg %p99
      %p254 = pneg %p123
      %p255 = pneg %p120
      %p256 = pneg %p144
      %p257 = pneg %p141
      %p258 = pneg %p165
      %p259 = pneg %p162
      %p260 = pneg %p191
      %p261 = pneg %p188
      %p262 = scmp.lt.s32.totalorder %s18, 1
      %s263 = scalar_select %p262, %s18, 1
      %s264 = smul.addr %s263, 8
      %s265 = scalar_lea.vmem %s7, %s264
      %p266 = scmp.lt.s32.totalorder %s18, 1
      %s267 = scalar_select %p266, %s18, 1
      %s268 = smul.addr %s267, 4
      %s269 = scalar_lea.vmem %s0, %s268
      %p270 = scmp.lt.s32.totalorder %s18, 1
      %s271 = scalar_select %p270, %s18, 1
      %s272 = smul.addr %s271, 8
      %s273 = scalar_lea.vmem %s7, %s272
      %v275 = vld [vmem:[%s269] sm:$0xf]
      %v276 = vld [vmem:[%s1] sm:$0xf]
      %v277 = vld [vmem:[%s1 + $0x4] sm:$0xf]
      %v278 = vld [vmem:[%s1 + $0x8] sm:$0xf]
      %v279 = vld [vmem:[%s1 + $0xc] sm:$0xf]
      %v280 = vld [vmem:[%s2] sm:$0x1]
      %v282 = vlaneseq
      %v283 = vshrl.u32 %v282, 7
      %v284 = vsub.s32 0, %v283
      %v285 = vrot.slane %v280, %v284
      %v291 = vunpack.c.l.b16 %v276
      %v292 = vunpack.c.l.b16 %v277
      %v293 = vunpack.c.l.b16 %v278
      %v294 = vunpack.c.l.b16 %v279
      %v295 = vpack.c.b16 %v292, %v291
      %v296 = vpack.c.b16 %v294, %v293
      %vm299 = vcmask 261120
      %v301 = vsel %vm299, %v275, 0
      %303 = vmatprep.subr.bf16.mxu0 0
      %304 = vmatpush1.bf16.msra.mxu0 %v295
      %305 = vmatprep.subr.bf16.mxu0 0
      %306 = vmatpush1.bf16.msra.mxu0 %v296
      %307 = vmatprep.subr.bf16.mxu0 0
      %308 = vmatpush1.bf16.msra.mxu0 0
      %309 = vmatprep.subr.bf16.mxu0 0
      %310 = vmatpush1.bf16.msra.mxu0 0
      %311 = vmatprep.subr.bf16.mxu0 0
      %312 = vmatpush1.bf16.msra.mxu0 0
      %313 = vmatprep.subr.bf16.mxu0 0
      %314 = vmatpush1.bf16.msra.mxu0 0
      %315 = vmatprep.subr.bf16.mxu0 0
      %316 = vmatpush1.bf16.msra.mxu0 0
      %317 = vmatprep.subr.bf16.mxu0 0
      %318 = vmatpush1.bf16.msra.mxu0 0
      %319 = vmatprep.subr.bf16.mxu0 0
      %320 = vmatpush1.bf16.msra.mxu0 0
      %321 = vmatprep.subr.bf16.mxu0 0
      %322 = vmatpush1.bf16.msra.mxu0 0
      %323 = vmatprep.subr.bf16.mxu0 0
      %324 = vmatpush1.bf16.msra.mxu0 0
      %325 = vmatprep.subr.bf16.mxu0 0
      %326 = vmatpush1.bf16.msra.mxu0 0
      %327 = vmatprep.subr.bf16.mxu0 0
      %328 = vmatpush1.bf16.msra.mxu0 0
      %329 = vmatprep.subr.bf16.mxu0 0
      %330 = vmatpush1.bf16.msra.mxu0 0
      %331 = vmatprep.subr.bf16.mxu0 0
      %332 = vmatpush1.bf16.msra.mxu0 0
      %333 = vmatprep.subr.bf16.mxu0 0
      %334 = vmatpush1.bf16.msra.mxu0 0
      %335 = vmatprep.mubr.bf16.mxu0 0
      %336 = vmatmul.mubr.bf16.gmra.mrb[0].mxu0 %v301
      %v337 = vpop.f32.mrb[0].mxu0
      %v338 = vadd.f32 %v285, %v337
      %v339 = vpop.f32.mrb[0].mxu0
      %v340 = vpop.f32.mrb[0].mxu0
      %v341 = vpop.f32.mrb[0].mxu0
      %342 = vdwg.mxu0
      %v343 = vmax.f32 %v338, 0.0
      %v344 = vpack.c.bf16 %v343, %v343
      %v345 = vld [vmem:[%s3] sm:$0xf]
      %v346 = vld [vmem:[%s3 + $0x4] sm:$0xf]
      %v347 = vld [vmem:[%s3 + $0x8] sm:$0xf]
      %v348 = vld [vmem:[%s3 + $0xc] sm:$0xf]
      %v349 = vld [vmem:[%s3 + $0x10] sm:$0xf]
      %v350 = vld [vmem:[%s3 + $0x14] sm:$0xf]
      %v351 = vld [vmem:[%s3 + $0x18] sm:$0xf]
      %v352 = vld [vmem:[%s3 + $0x1c] sm:$0xf]
      %v353 = vld [vmem:[%s4] sm:$0x1]
      %v355 = vlaneseq
      %v356 = vshrl.u32 %v355, 7
      %v357 = vsub.s32 0, %v356
      %v358 = vrot.slane %v353, %v357
      %v368 = vunpack.c.l.b16 %v345
      %v369 = vunpack.c.l.b16 %v346
      %v370 = vunpack.c.l.b16 %v347
      %v371 = vunpack.c.l.b16 %v348
      %v372 = vunpack.c.l.b16 %v349
      %v373 = vunpack.c.l.b16 %v350
      %v374 = vunpack.c.l.b16 %v351
      %v375 = vunpack.c.l.b16 %v352
      %v376 = vpack.c.b16 %v369, %v368
      %v377 = vpack.c.b16 %v371, %v370
      %v378 = vpack.c.b16 %v373, %v372
      %v379 = vpack.c.b16 %v375, %v374
      %vm384 = vcmask 523264
      %v386 = vsel %vm384, %v344, 0
      %388 = vmatprep.subr.bf16.mxu0 0
      %389 = vmatpush1.bf16.msra.mxu0 %v376
      %390 = vmatprep.subr.bf16.mxu0 0
      %391 = vmatpush1.bf16.msra.mxu0 %v377
      %392 = vmatprep.subr.bf16.mxu0 0
      %393 = vmatpush1.bf16.msra.mxu0 %v378
      %394 = vmatprep.subr.bf16.mxu0 0
      %395 = vmatpush1.bf16.msra.mxu0 %v379
      %396 = vmatprep.subr.bf16.mxu0 0
      %397 = vmatpush1.bf16.msra.mxu0 0
      %398 = vmatprep.subr.bf16.mxu0 0
      %399 = vmatpush1.bf16.msra.mxu0 0
      %400 = vmatprep.subr.bf16.mxu0 0
      %401 = vmatpush1.bf16.msra.mxu0 0
      %402 = vmatprep.subr.bf16.mxu0 0
      %403 = vmatpush1.bf16.msra.mxu0 0
      %404 = vmatprep.subr.bf16.mxu0 0
      %405 = vmatpush1.bf16.msra.mxu0 0
      %406 = vmatprep.subr.bf16.mxu0 0
      %407 = vmatpush1.bf16.msra.mxu0 0
      %408 = vmatprep.subr.bf16.mxu0 0
      %409 = vmatpush1.bf16.msra.mxu0 0
      %410 = vmatprep.subr.bf16.mxu0 0
      %411 = vmatpush1.bf16.msra.mxu0 0
      %412 = vmatprep.subr.bf16.mxu0 0
      %413 = vmatpush1.bf16.msra.mxu0 0
      %414 = vmatprep.subr.bf16.mxu0 0
      %415 = vmatpush1.bf16.msra.mxu0 0
      %416 = vmatprep.subr.bf16.mxu0 0
      %417 = vmatpush1.bf16.msra.mxu0 0
      %418 = vmatprep.subr.bf16.mxu0 0
      %419 = vmatpush1.bf16.msra.mxu0 0
      %420 = vmatprep.mubr.bf16.mxu0 0
      %421 = vmatmul.mubr.bf16.gmra.mrb[0].mxu0 %v386
      %v422 = vpop.f32.mrb[0].mxu0
      %v423 = vadd.f32 %v358, %v422
      %v424 = vpop.f32.mrb[0].mxu0
      %v425 = vpop.f32.mrb[0].mxu0
      %v426 = vpop.f32.mrb[0].mxu0
      %427 = vdwg.mxu0
      %v428 = vmax.f32 %v423, 0.0
      %v429 = vpack.c.bf16 %v428, %v428
      %v430 = vld [vmem:[%s5] sm:$0xf]
      %v431 = vld [vmem:[%s5 + $0x4] sm:$0xf]
      %v432 = vld [vmem:[%s5 + $0x8] sm:$0xf]
      %v433 = vld [vmem:[%s5 + $0xc] sm:$0xf]
      %v434 = vld [vmem:[%s5 + $0x10] sm:$0xf]
      %v435 = vld [vmem:[%s5 + $0x14] sm:$0xf]
      %v436 = vld [vmem:[%s5 + $0x18] sm:$0xf]
      %v437 = vld [vmem:[%s5 + $0x1c] sm:$0xf]
      %v438 = vld [vmem:[%s6] sm:$0x1]
      %v440 = vlaneseq
      %v441 = vshrl.u32 %v440, 7
      %v442 = vsub.s32 0, %v441
      %v443 = vrot.slane %v438, %v442
      %v453 = vunpack.c.l.b16 %v430
      %v454 = vunpack.c.l.b16 %v431
      %v455 = vunpack.c.l.b16 %v432
      %v456 = vunpack.c.l.b16 %v433
      %v457 = vunpack.c.l.b16 %v434
      %v458 = vunpack.c.l.b16 %v435
      %v459 = vunpack.c.l.b16 %v436
      %v460 = vunpack.c.l.b16 %v437
      %v461 = vpack.c.b16 %v454, %v453
      %v462 = vpack.c.b16 %v456, %v455
      %v463 = vpack.c.b16 %v458, %v457
      %v464 = vpack.c.b16 %v460, %v459
      %v470 = vsel %vm384, %v429, 0
      %472 = vmatprep.subr.bf16.mxu0 0
      %473 = vmatpush1.bf16.msra.mxu0 %v461
      %474 = vmatprep.subr.bf16.mxu0 0
      %475 = vmatpush1.bf16.msra.mxu0 %v462
      %476 = vmatprep.subr.bf16.mxu0 0
      %477 = vmatpush1.bf16.msra.mxu0 %v463
      %478 = vmatprep.subr.bf16.mxu0 0
      %479 = vmatpush1.bf16.msra.mxu0 %v464
      %480 = vmatprep.subr.bf16.mxu0 0
      %481 = vmatpush1.bf16.msra.mxu0 0
      %482 = vmatprep.subr.bf16.mxu0 0
      %483 = vmatpush1.bf16.msra.mxu0 0
      %484 = vmatprep.subr.bf16.mxu0 0
      %485 = vmatpush1.bf16.msra.mxu0 0
      %486 = vmatprep.subr.bf16.mxu0 0
      %487 = vmatpush1.bf16.msra.mxu0 0
      %488 = vmatprep.subr.bf16.mxu0 0
      %489 = vmatpush1.bf16.msra.mxu0 0
      %490 = vmatprep.subr.bf16.mxu0 0
      %491 = vmatpush1.bf16.msra.mxu0 0
      %492 = vmatprep.subr.bf16.mxu0 0
      %493 = vmatpush1.bf16.msra.mxu0 0
      %494 = vmatprep.subr.bf16.mxu0 0
      %495 = vmatpush1.bf16.msra.mxu0 0
      %496 = vmatprep.subr.bf16.mxu0 0
      %497 = vmatpush1.bf16.msra.mxu0 0
      %498 = vmatprep.subr.bf16.mxu0 0
      %499 = vmatpush1.bf16.msra.mxu0 0
      %500 = vmatprep.subr.bf16.mxu0 0
      %501 = vmatpush1.bf16.msra.mxu0 0
      %502 = vmatprep.subr.bf16.mxu0 0
      %503 = vmatpush1.bf16.msra.mxu0 0
      %504 = vmatprep.mubr.bf16.mxu0 0
      %505 = vmatmul.mubr.bf16.gmra.mrb[0].mxu0 %v470
      %v506 = vpop.f32.mrb[0].mxu0
      %v507 = vadd.f32 %v443, %v506
      %v508 = vpop.f32.mrb[0].mxu0
      %v509 = vpop.f32.mrb[0].mxu0
      %v510 = vpop.f32.mrb[0].mxu0
      %511 = vdwg.mxu0
      %v512 = vlaneseq
      %v513 = vand.u32 %v512, 127
      %vm514 = vcmp.ge.s32.totalorder %v513, 8
      %vm515 = vcmp.lt.s32.totalorder %v513, 16
      %vm516 = vmand %vm514, %vm515
      %v517 = vmax.f32 %v507, -20.0
      %v518 = vmin.f32 %v517, 2.0
      %v519 = vsel %vm516, %v518, %v507
      %520 = vst [vmem:[%s273] sm:$0xff] %v519
      %p521 = scmp.lt.s32.totalorder %s18, 1
      %s522 = scalar_select %p521, %s18, 1
      %s523 = smul.addr %s522, 8
      %s524 = scalar_lea.vmem %s7, %s523
      // Predicated region
      $region49: #{gaussian_actor_forward.1} parent=47 // pred_check
        %p525 = pneg %p188
      $region50: #{gaussian_actor_forward.1} parent=47 // pred_check_branch
        %527 = sbr.rel (%p525) target = $region52
      $region51: #{gaussian_actor_forward.1} parent=47 // pred_region
        _
      $region52: #{gaussian_actor_forward.1} parent=47 // pred_fallthru
        _
    $region48: #{gaussian_actor_forward.1} parent=5 // pred_fallthru
      _
    %p528 = scmp.le.s32.totalorder 2, %s13
    // Predicated region
    $region53: #{gaussian_actor_forward.1} parent=5 // pred_check
      %p529 = pneg %p528
    $region54: #{gaussian_actor_forward.1} parent=5 // pred_check_branch
      %531 = sbr.rel (%p529) target = $region56
    $region55: #{gaussian_actor_forward.1} parent=5 // pred_region
      %s532 = ssub.s32 %s13, 2
      // Predicated region
      $region57: #{gaussian_actor_forward.1} parent=55 // pred_check
        %p533 = pneg %p194
      $region58: #{gaussian_actor_forward.1} parent=55 // pred_check_branch
        %535 = sbr.rel (%p533) target = $region60
      $region59: #{gaussian_actor_forward.1} parent=55 // pred_region
        %p536 = scmp.lt.s32.totalorder %s19, 1
        %s537 = scalar_select %p536, %s19, 1
        %s538 = smul.addr %s537, 8
        %s539 = scalar_lea.vmem %s7, %s538
      $region60: #{gaussian_actor_forward.1} parent=55 // pred_fallthru
        _
    $region56: #{gaussian_actor_forward.1} parent=5 // pred_fallthru
      _
  $region6: #{gaussian_actor_forward.1} parent=0 // loop_footer
    %s17 = sadd.s32 1, %s13
  $region7: #{gaussian_actor_forward.1} parent=0 // loop_footer_branch
    %12 = sbr.rel target = $region3
  $region8: #{gaussian_actor_forward.1} parent=0 // loop_exit
    _

</llo_original>
